<compile_context>
chip_gen: v7x
topology: tpu7x:2x2x1
jax: 0.10.0
libtpu: 0.0.40
codegen_flags: <defaults>
</compile_context>

<pallas_src>
import functools

import jax
import jax.numpy as jnp
from jax.experimental import pallas as pl
from jax.experimental.pallas import tpu as pltpu

_LANE = 128
_SUBLANE = 8
_NEG_BIG = -1e30          # masks padded hidden columns (exp underflows to 0)
_VMEM_BUDGET = 48 << 20   # working-set cap: fits v7x 64 MiB/TC with headroom


def _round_up(n, m):
    return ((n + m - 1) // m) * m


def _cdiv(a, b):
    return -(-a // b)


def _vmem_bytes(tm, in_dim, h_pad, mxu_itemsize):
    # Double-buffered x and out tiles + (conservatively double-buffered)
    # weight + bias.  All static Python ints.
    return (2 * tm * in_dim * mxu_itemsize
            + 2 * in_dim * h_pad * mxu_itemsize
            + 2 * h_pad * 4
            + 2 * tm * h_pad * 4)


def _choose_tiling(batch, in_dim, h_pad, block_rows, mxu_itemsize):
    """Pick (TM, num_tiles) bounding padding waste and the VMEM working set."""
    tm_cap = _round_up(max(min(block_rows, batch), 1), _SUBLANE)
    # Shrink the tile until the double-buffered working set fits the budget.
    while tm_cap > _SUBLANE and _vmem_bytes(tm_cap, in_dim, h_pad, mxu_itemsize) > _VMEM_BUDGET:
        tm_cap = max(_SUBLANE, _round_up(tm_cap // 2, _SUBLANE))
    num_tiles = _cdiv(batch, tm_cap)
    # v7x megacore: make sure both TensorCores get at least one grid step.
    if num_tiles == 1 and batch > _SUBLANE:
        num_tiles = 2
    tm = _round_up(_cdiv(batch, num_tiles), _SUBLANE)   # waste < 8 rows / tile
    return tm, num_tiles


def prepare_ffnn_params(w_t, b, mxu_dtype=jnp.bfloat16):
    """Pad + cast fc1 parameters ONCE (reuse across forward calls).

    Args:
      w_t: (input_size, H) f32 -- transpose of PyTorch fc1.weight.
      b:   (H,) f32            -- fc1.bias.
    Returns:
      w_p: (input_size, H_pad) mxu_dtype, H_pad = round_up(H, 128)
      b_p: (1, H_pad) f32; padded columns hold a large negative value so they
           vanish under softmax (sliced off by the wrapper either way).
    """
    in_dim, h = w_t.shape
    assert b.shape == (h,)
    h_pad = _round_up(h, _LANE)
    w_p = w_t if h_pad == h else jnp.pad(w_t, ((0, 0), (0, h_pad - h)))
    w_p = w_p.astype(mxu_dtype)
    b_f32 = b.astype(jnp.float32)
    if h_pad != h:
        b_f32 = jnp.pad(b_f32, ((0, h_pad - h),), constant_values=_NEG_BIG)
    b_p = b_f32.reshape(1, h_pad)
    return w_p, b_p


def _ffnn_softmax_kernel(x_ref, w_ref, b_ref, o_ref):
    # Linear: (TM, In)bf16 @ (In, Hp)bf16 -> f32 accumulation on the MXU.
    logits = jnp.dot(x_ref[...], w_ref[...], preferred_element_type=jnp.float32)
    logits = logits + b_ref[...]
    # Numerically-stable softmax over the last (hidden) axis, f32 throughout.
    # Padded columns carry a huge negative bias, so exp() underflows to 0 and
    # they do not contribute to the row sum.
    m = jnp.max(logits, axis=-1, keepdims=True)
    e = jnp.exp(logits - m)
    denom = jnp.sum(e, axis=-1, keepdims=True)
    o_ref[...] = (e / denom).astype(o_ref.dtype)   # exact normalization


def _ffnn_linear_kernel(x_ref, w_ref, b_ref, o_ref):
    logits = jnp.dot(x_ref[...], w_ref[...], preferred_element_type=jnp.float32)
    # NOTE: padded hidden columns hold ~-1e30 here; the wrapper slices [:H].
    o_ref[...] = (logits + b_ref[...]).astype(o_ref.dtype)


@functools.partial(jax.jit,
                   static_argnames=("hidden_size", "linear_activation", "block_rows"))
def ffnn_forward(x, w_p, b_p, *, hidden_size, linear_activation=False,
                 block_rows=512):
    """Pallas implementation of FFNN.forward.

    Args:
      x:   (B, input_size) float32
      w_p: (input_size, H_pad) padded/cast weight from prepare_ffnn_params
      b_p: (1, H_pad) padded f32 bias from prepare_ffnn_params
      hidden_size: logical H (un-padded fc1 output width), static.
      linear_activation: if True, skip softmax (return raw logits).
      block_rows: max batch-tile height.
    Returns:
      (B, hidden_size) float32
    """
    batch, in_dim = x.shape
    in_dim2, h_pad = w_p.shape
    assert in_dim == in_dim2, (in_dim, in_dim2)
    assert h_pad % _LANE == 0 and b_p.shape == (1, h_pad)
    assert hidden_size <= h_pad

    mxu_itemsize = jnp.dtype(w_p.dtype).itemsize
    tm, num_tiles = _choose_tiling(batch, in_dim, h_pad, block_rows, mxu_itemsize)
    b_pad = num_tiles * tm

    x_p = x if b_pad == batch else jnp.pad(x, ((0, b_pad - batch), (0, 0)))
    x_p = x_p.astype(w_p.dtype)   # feed the MXU in bf16; halves x DMA bytes too

    kernel = _ffnn_linear_kernel if linear_activation else _ffnn_softmax_kernel

    needed = _vmem_bytes(tm, in_dim, h_pad, mxu_itemsize)
    vmem_limit = int(min(max(needed + (4 << 20), 16 << 20), 56 << 20))

    out_p = pl.pallas_call(
        kernel,
        out_shape=jax.ShapeDtypeStruct((b_pad, h_pad), jnp.float32),
        grid=(num_tiles,),
        in_specs=[
            pl.BlockSpec((tm, in_dim), lambda i: (i, 0)),     # x tile, pipelined
            pl.BlockSpec((in_dim, h_pad), lambda i: (0, 0)),  # weight, VMEM-resident
            pl.BlockSpec((1, h_pad), lambda i: (0, 0)),       # bias, VMEM-resident
        ],
        out_specs=pl.BlockSpec((tm, h_pad), lambda i: (i, 0)),
        compiler_params=pltpu.CompilerParams(
            dimension_semantics=("parallel",),
            vmem_limit_bytes=vmem_limit),
    )(x_p, w_p, b_p)

    if b_pad == batch and h_pad == hidden_size:
        return out_p                      # no padding -> no extra slice traffic
    return out_p[:batch, :hidden_size]


def _reference(x, w_t, b, linear_activation=False, mxu_dtype=jnp.float32):
    logits = jnp.dot(x.astype(mxu_dtype), w_t.astype(mxu_dtype),
                     preferred_element_type=jnp.float32) + b
    if linear_activation:
        return logits
    m = jnp.max(logits, axis=-1, keepdims=True)
    e = jnp.exp(logits - m)
    return e / jnp.sum(e, axis=-1, keepdims=True)


if __name__ == "__main__":
    # Small shapes consistent with the module: fc1 maps input_size -> hidden_size.
    B, INPUT_SIZE, HIDDEN_SIZE = 16, 32, 64

    key = jax.random.PRNGKey(0)
    kx, kw, kb = jax.random.split(key, 3)

    x = jax.random.normal(kx, (B, INPUT_SIZE), dtype=jnp.float32)
    bound = 1.0 / (INPUT_SIZE ** 0.5)
    w_t = jax.random.uniform(kw, (INPUT_SIZE, HIDDEN_SIZE), jnp.float32,
                             minval=-bound, maxval=bound)
    b = jax.random.uniform(kb, (HIDDEN_SIZE,), jnp.float32,
                           minval=-bound, maxval=bound)

    # Pad + cast parameters once (hoisted out of the per-call path).
    w_p, b_p = prepare_ffnn_params(w_t, b, mxu_dtype=jnp.bfloat16)

    # Softmax path; block_rows=8 forces a multi-step batch grid to exercise
    # the pipelined (and megacore-shardable) path even at this toy batch size.
    out = jax.block_until_ready(
        ffnn_forward(x, w_p, b_p, hidden_size=HIDDEN_SIZE,
                     linear_activation=False, block_rows=8))
    assert out.shape == (B, HIDDEN_SIZE)
    # Matched-precision reference (same bf16 matmul feed) -> tight tolerance.
    ref_bf16 = _reference(x, w_t, b, linear_activation=False, mxu_dtype=jnp.bfloat16)
    assert jnp.allclose(out, ref_bf16, atol=1e-4, rtol=1e-4), "softmax mismatch vs matched reference"
    # Full-f32 reference -> loose tolerance (bf16 MXU feed is a perf choice).
    ref_f32 = _reference(x, w_t, b, linear_activation=False)
    assert jnp.allclose(out, ref_f32, atol=2e-2), "softmax mismatch vs f32 reference"
    # Exact normalization -> rows sum to 1 within f32 rounding.
    assert jnp.allclose(jnp.sum(out, axis=-1), jnp.ones((B,)), atol=1e-4)

    # Linear-activation path (raw logits).
    out_lin = jax.block_until_ready(
        ffnn_forward(x, w_p, b_p, hidden_size=HIDDEN_SIZE,
                     linear_activation=True, block_rows=8))
    ref_lin_bf16 = _reference(x, w_t, b, linear_activation=True, mxu_dtype=jnp.bfloat16)
    assert jnp.allclose(out_lin, ref_lin_bf16, atol=1e-4, rtol=1e-4), "linear mismatch vs matched reference"
    ref_lin_f32 = _reference(x, w_t, b, linear_activation=True)
    assert jnp.allclose(out_lin, ref_lin_f32, atol=5e-2), "linear mismatch vs f32 reference"

    print("KERNEL_OK")
</pallas_src>

<mosaic_0001>
module attributes {stable_mosaic.version = 11 : i64} {
  func.func @_ffnn_softmax_kernel(%arg0: i32, %arg1: memref<8x32xbf16, #tpu.memory_space<vmem>>, %arg2: memref<32x128xbf16, #tpu.memory_space<vmem>>, %arg3: memref<1x128xf32, #tpu.memory_space<vmem>>, %arg4: memref<8x128xf32, #tpu.memory_space<vmem>>) attributes {dimension_semantics = [#tpu.dimension_semantics<parallel>], iteration_bounds = array<i64: 2>, scalar_prefetch = 0 : i64, scratch_operands = 0 : i64, tpu.core_type = #tpu.core_type<tc>, window_params = [{transform_indices = @transform_0, window_bounds = array<i64: 8, 32>}, {pipeline_mode = #tpu.pipeline_mode<synchronous>, transform_indices = @transform_1, window_bounds = array<i64: 32, 128>}, {pipeline_mode = #tpu.pipeline_mode<synchronous>, transform_indices = @transform_2, window_bounds = array<i64: 1, 128>}, {transform_indices = @transform_3, window_bounds = array<i64: 8, 128>}]} {
    %c0 = arith.constant 0 : index
    %c0_0 = arith.constant 0 : index
    %0 = vector.load %arg1[%c0, %c0_0] : memref<8x32xbf16, #tpu.memory_space<vmem>>, vector<8x32xbf16>
    %c0_1 = arith.constant 0 : index
    %c0_2 = arith.constant 0 : index
    %1 = vector.load %arg2[%c0_1, %c0_2] : memref<32x128xbf16, #tpu.memory_space<vmem>>, vector<32x128xbf16>
    %cst = arith.constant dense<0.000000e+00> : vector<8x128xf32>
    %2 = tpu.matmul %0, %1, %cst {dimension_numbers = #tpu.dot_dimension_numbers<[1], [0], [0], [1], [0, 0, 1, 1], [], []>} : vector<8x32xbf16>, vector<32x128xbf16>, vector<8x128xf32> -> vector<8x128xf32>
    %c0_3 = arith.constant 0 : index
    %c0_4 = arith.constant 0 : index
    %3 = vector.load %arg3[%c0_3, %c0_4] : memref<1x128xf32, #tpu.memory_space<vmem>>, vector<1x128xf32>
    %4 = vector.broadcast %3 : vector<1x128xf32> to vector<8x128xf32>
    %5 = arith.addf %2, %4 : vector<8x128xf32>
    %cst_5 = arith.constant dense<0xFF800000> : vector<8xf32>
    %6 = vector.multi_reduction <maximumf>, %5, %cst_5 [1] : vector<8x128xf32> to vector<8xf32>
    %7 = vector.shape_cast %6 : vector<8xf32> to vector<8x1xf32>
    %8 = vector.broadcast %7 : vector<8x1xf32> to vector<8x128xf32>
    %9 = arith.subf %5, %8 : vector<8x128xf32>
    %10 = math.exp %9 : vector<8x128xf32>
    %cst_6 = arith.constant dense<0.000000e+00> : vector<8xf32>
    %11 = vector.multi_reduction <add>, %10, %cst_6 [1] : vector<8x128xf32> to vector<8xf32>
    %12 = vector.shape_cast %11 : vector<8xf32> to vector<8x1xf32>
    %13 = vector.broadcast %12 : vector<8x1xf32> to vector<8x128xf32>
    %14 = arith.divf %10, %13 : vector<8x128xf32>
    %c0_7 = arith.constant 0 : index
    %c0_8 = arith.constant 0 : index
    %15 = vector.load %arg4[%c0_7, %c0_8] : memref<8x128xf32, #tpu.memory_space<vmem>>, vector<8x128xf32>
    tpu.vector_store %arg4[%c0_7, %c0_8], %14 {strides = array<i32>} : memref<8x128xf32, #tpu.memory_space<vmem>>, vector<8x128xf32>,
    return
  }
  func.func @transform_0(%arg0: i32) -> (i32, i32) {
    %c0_i32 = arith.constant 0 : i32
    %c0_i32_0 = arith.constant 0 : i32
    return %arg0, %c0_i32 : i32, i32
  }
  func.func @transform_1(%arg0: i32) -> (i32, i32) {
    %c0_i32 = arith.constant 0 : i32
    %c0_i32_0 = arith.constant 0 : i32
    %c0_i32_1 = arith.constant 0 : i32
    return %c0_i32, %c0_i32_0 : i32, i32
  }
  func.func @transform_2(%arg0: i32) -> (i32, i32) {
    %c0_i32 = arith.constant 0 : i32
    %c0_i32_0 = arith.constant 0 : i32
    %c0_i32_1 = arith.constant 0 : i32
    return %c0_i32, %c0_i32_0 : i32, i32
  }
  func.func @transform_3(%arg0: i32) -> (i32, i32) {
    %c0_i32 = arith.constant 0 : i32
    %c0_i32_0 = arith.constant 0 : i32
    return %arg0, %c0_i32 : i32, i32
  }
}

</mosaic_0001>

<llo_original>
// kernel: ffnn_forward.1
$region0: #{ffnn_forward.1}
  #allocation0 [shape = 'u32[]', space=smem, size = 0x4, offset = 0x4, fixed_abs, tag = 'smem constant byte address 0x4 - core index']
  #allocation1 [shape = 'u32[144,128]{1,0:T(1,128)}', space=vmem, size = 0x12000, scoped, tag = 'internal scratch']
  %s0 = inlined_call_operand.vmem [shape: bf16[16,32], index: 0, kind: input, shape index: {}]
  %s1 = inlined_call_operand.vmem [shape: bf16[32,128], index: 1, kind: input, shape index: {}]
  %s2 = inlined_call_operand.vmem [shape: f32[1,128], index: 2, kind: input, shape index: {}]
  %s3 = inlined_call_operand.hbm [shape: f32[16,128], index: 3, kind: output, shape index: {}]
  %s4 = sld [smem:[#allocation0]]
  $region45: #{ffnn_forward.1} parent=0
    _
  %s6 = ssub.s32 1, %s4
  %s7 = scalar_select 0, %s6, %s4
  $region1: #{ffnn_forward.1} parent=0
    #allocation2 [shape = 'u8[8192]{0}', space=vmem, size = 0x2000, scoped, tag = 'output window, operand 0']
    #allocation3 [shape = 's32[2]{0}', space=sflag, size = 0x8, scoped, tag = 'scoped memory for ffnn_forward.1']
    %8 = vsyncpa [#allocation3], 0
    %s9 = scalar_lea.sflag [#allocation3], 1
    %10 = vsyncpa %s9, 0
    loop: start=0, step=1, limit=4
    $region2: #{ffnn_forward.1} parent=1 // loop_pre_header
      _
    $region3: #{ffnn_forward.1} parent=1 // loop_header
      %s12 = sphi 0, %s16
      %p13 = scmp.ge.s32.totalorder %s12, 4
      %s22 = sphi 0, %s24
      %s25 = sphi 0, %s22
      %s26 = sphi 0, %s25
      %s42 = sphi 0, %s26
      %s46 = sphi 0, %s46
      %s48 = sphi 0, %s46
      %s49 = sphi 0, %s48
      %s63 = sphi 0, %s49
      %s67 = sphi 0, %s67
      %s69 = sphi 0, %s67
      %s70 = sphi 0, %s69
      %s84 = sphi 0, %s70
      %s90 = sphi 0, %s92
      %s93 = sphi 0, %s90
      %s94 = sphi 0, %s93
      %s110 = sphi 0, %s94
    $region4: #{ffnn_forward.1} parent=1 // loop_header_branch
      %15 = sbr.rel (%p13) target = $region8
    $region5: #{ffnn_forward.1} parent=1 // loop_body
      %s17 = ssub.s32 %s12, 1
      %s18 = ssub.s32 %s12, 2
      %s19 = sadd.s32 %s12, 1
      %s20 = ssub.s32 %s12, %s19
      %p21 = scmp.eq.s32.totalorder %s20, 0
      %s23 = sadd.s32 %s22, 1
      %s24 = scalar_select %p21, %s22, %s23
      %p27 = pneg %p21
      %p28 = scmp.eq.s32.totalorder %s12, 1
      %p29 = por %p27, %p28
      %p30 = scmp.ne.s32.totalorder %s22, %s25
      %p31 = scmp.eq.s32.totalorder %s12, 0
      %p32 = por %p30, %p31
      %p33 = scmp.ne.s32.totalorder %s22, %s25
      %p34 = scmp.eq.s32.totalorder %s17, 1
      %p35 = por %p33, %p34
      %p36 = scmp.ne.s32.totalorder %s25, %s26
      %p37 = scmp.eq.s32.totalorder %s17, 0
      %p38 = por %p36, %p37
      %p39 = scmp.ne.s32.totalorder %s25, %s26
      %p40 = scmp.eq.s32.totalorder %s18, 1
      %p41 = por %p39, %p40
      %p43 = scmp.ne.s32.totalorder %s26, %s42
      %p44 = scmp.eq.s32.totalorder %s18, 0
      %p45 = por %p43, %p44
      %s47 = sadd.s32 %s46, 1
      %p50 = scmp.eq.s32.totalorder %s12, 1
      %p51 = scmp.ne.s32.totalorder %s46, %s48
      %p52 = scmp.eq.s32.totalorder %s12, 0
      %p53 = por %p51, %p52
      %p54 = scmp.ne.s32.totalorder %s46, %s48
      %p55 = scmp.eq.s32.totalorder %s17, 1
      %p56 = por %p54, %p55
      %p57 = scmp.ne.s32.totalorder %s48, %s49
      %p58 = scmp.eq.s32.totalorder %s17, 0
      %p59 = por %p57, %p58
      %p60 = scmp.ne.s32.totalorder %s48, %s49
      %p61 = scmp.eq.s32.totalorder %s18, 1
      %p62 = por %p60, %p61
      %p64 = scmp.ne.s32.totalorder %s49, %s63
      %p65 = scmp.eq.s32.totalorder %s18, 0
      %p66 = por %p64, %p65
      %s68 = sadd.s32 %s67, 1
      %p71 = scmp.eq.s32.totalorder %s12, 1
      %p72 = scmp.ne.s32.totalorder %s67, %s69
      %p73 = scmp.eq.s32.totalorder %s12, 0
      %p74 = por %p72, %p73
      %p75 = scmp.ne.s32.totalorder %s67, %s69
      %p76 = scmp.eq.s32.totalorder %s17, 1
      %p77 = por %p75, %p76
      %p78 = scmp.ne.s32.totalorder %s69, %s70
      %p79 = scmp.eq.s32.totalorder %s17, 0
      %p80 = por %p78, %p79
      %p81 = scmp.ne.s32.totalorder %s69, %s70
      %p82 = scmp.eq.s32.totalorder %s18, 1
      %p83 = por %p81, %p82
      %p85 = scmp.ne.s32.totalorder %s70, %s84
      %p86 = scmp.eq.s32.totalorder %s18, 0
      %p87 = por %p85, %p86
      %s88 = ssub.s32 %s12, %s19
      %p89 = scmp.eq.s32.totalorder %s88, 0
      %s91 = sadd.s32 %s90, 1
      %s92 = scalar_select %p89, %s90, %s91
      %p95 = pneg %p89
      %p96 = scmp.eq.s32.totalorder %s12, 1
      %p97 = por %p95, %p96
      %p98 = scmp.ne.s32.totalorder %s90, %s93
      %p99 = scmp.eq.s32.totalorder %s12, 0
      %p100 = por %p98, %p99
      %p101 = scmp.ne.s32.totalorder %s90, %s93
      %p102 = scmp.eq.s32.totalorder %s17, 1
      %p103 = por %p101, %p102
      %p104 = scmp.ne.s32.totalorder %s93, %s94
      %p105 = scmp.eq.s32.totalorder %s17, 0
      %p106 = por %p104, %p105
      %p107 = scmp.ne.s32.totalorder %s93, %s94
      %p108 = scmp.eq.s32.totalorder %s18, 1
      %p109 = por %p107, %p108
      %p111 = scmp.ne.s32.totalorder %s94, %s110
      %p112 = scmp.eq.s32.totalorder %s18, 0
      %p113 = por %p111, %p112
      %p114 = scmp.le.s32.totalorder 1, %s12
      %p115 = scmp.lt.s32.totalorder %s12, 3
      %p116 = pnand %p114, %p115
      %p117 = pneg %p116
      // Predicated region
      $region9: #{ffnn_forward.1} parent=5 // pred_check
        _
      $region10: #{ffnn_forward.1} parent=5 // pred_check_branch
        %119 = sbr.rel (%p116) target = $region12
      $region11: #{ffnn_forward.1} parent=5 // pred_region
        %s120 = ssub.s32 %s12, 1
        // Predicated region
        $region13: #{ffnn_forward.1} parent=11 // pred_check
          %p121 = pneg %p59
        $region14: #{ffnn_forward.1} parent=11 // pred_check_branch
          %123 = sbr.rel (%p121) target = $region16
        $region15: #{ffnn_forward.1} parent=11 // pred_region
          _
        $region16: #{ffnn_forward.1} parent=11 // pred_fallthru
          _
        // Predicated region
        $region17: #{ffnn_forward.1} parent=11 // pred_check
          %p124 = pneg %p80
        $region18: #{ffnn_forward.1} parent=11 // pred_check_branch
          %126 = sbr.rel (%p124) target = $region20
        $region19: #{ffnn_forward.1} parent=11 // pred_region
          _
        $region20: #{ffnn_forward.1} parent=11 // pred_fallthru
          _
      $region12: #{ffnn_forward.1} parent=5 // pred_fallthru
        _
      %p127 = scmp.lt.s32.totalorder %s12, 2
      // Predicated region
      $region21: #{ffnn_forward.1} parent=5 // pred_check
        %p128 = pneg %p127
      $region22: #{ffnn_forward.1} parent=5 // pred_check_branch
        %130 = sbr.rel (%p128) target = $region24
      $region23: #{ffnn_forward.1} parent=5 // pred_region
        // Predicated region
        $region25: #{ffnn_forward.1} parent=23 // pred_check
          %p131 = pneg %p32
        $region26: #{ffnn_forward.1} parent=23 // pred_check_branch
          %133 = sbr.rel (%p131) target = $region28
        $region27: #{ffnn_forward.1} parent=23 // pred_region
          %p134 = scmp.lt.s32.totalorder %s12, 1
          %s135 = scalar_select %p134, %s12, 1
          %s136 = smul.addr %s135, 4
          %s137 = scalar_lea.vmem %s0, %s136
        $region28: #{ffnn_forward.1} parent=23 // pred_fallthru
          _
      $region24: #{ffnn_forward.1} parent=5 // pred_fallthru
        _
      %p138 = scmp.le.s32.totalorder 1, %s12
      %p139 = scmp.lt.s32.totalorder %s12, 3
      %p140 = pnand %p138, %p139
      %p141 = pneg %p140
      // Predicated region
      $region29: #{ffnn_forward.1} parent=5 // pred_check
        _
      $region30: #{ffnn_forward.1} parent=5 // pred_check_branch
        %143 = sbr.rel (%p140) target = $region32
      $region31: #{ffnn_forward.1} parent=5 // pred_region
        %s144 = ssub.s32 %s12, 1
        %p145 = scmp.lt.s32.totalorder %s17, 1
        %s146 = scalar_select %p145, %s17, 1
        %s147 = smul.addr %s146, 4
        %s148 = scalar_lea.vmem %s0, %s147
        %p149 = pneg %p38
        %p150 = pneg %p35
        %p151 = pneg %p59
        %p152 = pneg %p56
        %p153 = pneg %p80
        %p154 = pneg %p77
        %p155 = pneg %p106
        %p156 = pneg %p103
        %s157 = sand.u32 %s93, 1
        %s158 = scalar_lea.sflag [#allocation3], %s157
        %s159 = sand.u32 %s93, 1
        %s160 = smul.addr %s159, 8
        %s161 = scalar_lea.vmem [#allocation2], %s160
        %p162 = scmp.lt.s32.totalorder %s17, 1
        %s163 = scalar_select %p162, %s17, 1
        %s164 = smul.addr %s163, 4
        %s165 = scalar_lea.vmem %s0, %s164
        %v167 = vld [vmem:[%s165] sm:$0xf]
        %v168 = vld [vmem:[%s1] sm:$0xf]
        %v169 = vld [vmem:[%s1 + $0x4] sm:$0xf]
        %v170 = vld [vmem:[%s1 + $0x8] sm:$0xf]
        %v171 = vld [vmem:[%s1 + $0xc] sm:$0xf]
        %v172 = vld [vmem:[%s2] sm:$0x1]
        %v174 = vlaneseq
        %v175 = vshrl.u32 %v174, 7
        %v176 = vsub.s32 0, %v175
        %v177 = vrot.slane %v172, %v176
        %v183 = vunpack.c.l.b16 %v168
        %v184 = vunpack.c.l.b16 %v169
        %v185 = vunpack.c.l.b16 %v170
        %v186 = vunpack.c.l.b16 %v171
        %v187 = vpack.c.b16 %v184, %v183
        %v188 = vpack.c.b16 %v186, %v185
        %vm191 = vcmask 261120
        %v193 = vsel %vm191, %v167, 0
        %195 = vmatprep.subr.bf16.mxu0 0
        %196 = vmatpush1.bf16.msra.mxu0 %v187
        %197 = vmatprep.subr.bf16.mxu0 0
        %198 = vmatpush1.bf16.msra.mxu0 %v188
        %199 = vmatprep.subr.bf16.mxu0 0
        %200 = vmatpush1.bf16.msra.mxu0 0
        %201 = vmatprep.subr.bf16.mxu0 0
        %202 = vmatpush1.bf16.msra.mxu0 0
        %203 = vmatprep.subr.bf16.mxu0 0
        %204 = vmatpush1.bf16.msra.mxu0 0
        %205 = vmatprep.subr.bf16.mxu0 0
        %206 = vmatpush1.bf16.msra.mxu0 0
        %207 = vmatprep.subr.bf16.mxu0 0
        %208 = vmatpush1.bf16.msra.mxu0 0
        %209 = vmatprep.subr.bf16.mxu0 0
        %210 = vmatpush1.bf16.msra.mxu0 0
        %211 = vmatprep.subr.bf16.mxu0 0
        %212 = vmatpush1.bf16.msra.mxu0 0
        %213 = vmatprep.subr.bf16.mxu0 0
        %214 = vmatpush1.bf16.msra.mxu0 0
        %215 = vmatprep.subr.bf16.mxu0 0
        %216 = vmatpush1.bf16.msra.mxu0 0
        %217 = vmatprep.subr.bf16.mxu0 0
        %218 = vmatpush1.bf16.msra.mxu0 0
        %219 = vmatprep.subr.bf16.mxu0 0
        %220 = vmatpush1.bf16.msra.mxu0 0
        %221 = vmatprep.subr.bf16.mxu0 0
        %222 = vmatpush1.bf16.msra.mxu0 0
        %223 = vmatprep.subr.bf16.mxu0 0
        %224 = vmatpush1.bf16.msra.mxu0 0
        %225 = vmatprep.subr.bf16.mxu0 0
        %226 = vmatpush1.bf16.msra.mxu0 0
        %227 = vmatprep.mubr.bf16.mxu0 0
        %228 = vmatmul.mubr.bf16.gmra.mrb[0].mxu0 %v193
        %v229 = vpop.f32.mrb[0].mxu0
        %v230 = vadd.f32 %v177, %v229
        %v231 = vpop.f32.mrb[0].mxu0
        %v232 = vpop.f32.mrb[0].mxu0
        %v233 = vpop.f32.mrb[0].mxu0
        %234 = vdwg.mxu0
        %235 = vmax.xlane.f32.xlu0 %v230
        %v236 = vpop.xlane.xlu0 %235
        %v237 = vsub.f32 %v230, %v236
        %v238 = vmul.f32 %v237, 1.442695
        %v239 = vpow.pop %v238
        %240 = vadd.xlane.f32.xlu0 %v239
        %v241 = vpop.xlane.xlu0 %240
        %v242 = vrcp.pop %v241
        %v243 = vmul.f32 %v239, %v242
        %244 = vst [vmem:[%s161] sm:$0xff] %v243
        %s245 = sand.u32 %s93, 1
        %s246 = scalar_lea.sflag [#allocation3], %s245
        %s247 = sand.u32 %s93, 1
        %s248 = smul.addr %s247, 8
        %s249 = scalar_lea.vmem [#allocation2], %s248
        // Predicated region
        $region33: #{ffnn_forward.1} parent=31 // pred_check
          %p250 = pneg %p103
        $region34: #{ffnn_forward.1} parent=31 // pred_check_branch
          %252 = sbr.rel (%p250) target = $region36
        $region35: #{ffnn_forward.1} parent=31 // pred_region
          %s254 = ssub.s32 128, 128
          %255 = vsyncadd %s246, %s254
          %s256 = smul.addr %s17, 128
          %s257 = scalar_lea.hbm %s3, %s256
          %s259 = sshll.u32 %s249, 4
          %s260 = int_to_ptr.vmem [resolvable:$true] %s259
          %262 = dma.vmem_to_hbm [thread:$0]  %s260, 128, %s257, %s246
        $region36: #{ffnn_forward.1} parent=31 // pred_fallthru
          _
      $region32: #{ffnn_forward.1} parent=5 // pred_fallthru
        _
      %p263 = scmp.le.s32.totalorder 2, %s12
      // Predicated region
      $region37: #{ffnn_forward.1} parent=5 // pred_check
        %p264 = pneg %p263
      $region38: #{ffnn_forward.1} parent=5 // pred_check_branch
        %266 = sbr.rel (%p264) target = $region40
      $region39: #{ffnn_forward.1} parent=5 // pred_region
        %s267 = ssub.s32 %s12, 2
        // Predicated region
        $region41: #{ffnn_forward.1} parent=39 // pred_check
          %p268 = pneg %p109
        $region42: #{ffnn_forward.1} parent=39 // pred_check_branch
          %270 = sbr.rel (%p268) target = $region44
        $region43: #{ffnn_forward.1} parent=39 // pred_region
          %s271 = sand.u32 %s94, 1
          %s272 = scalar_lea.sflag [#allocation3], %s271
          %s273 = sand.u32 %s94, 1
          %s274 = smul.addr %s273, 8
          %s275 = scalar_lea.vmem [#allocation2], %s274
          %276 = dma.done %s272, 128
        $region44: #{ffnn_forward.1} parent=39 // pred_fallthru
          _
      $region40: #{ffnn_forward.1} parent=5 // pred_fallthru
        _
    $region6: #{ffnn_forward.1} parent=1 // loop_footer
      %s16 = sadd.s32 1, %s12
    $region7: #{ffnn_forward.1} parent=1 // loop_footer_branch
      %11 = sbr.rel target = $region3
    $region8: #{ffnn_forward.1} parent=1 // loop_exit
      _
    %277 = vsyncpa [#allocation3], 1
    %s278 = scalar_lea.sflag [#allocation3], 1
    %279 = vsyncpa %s278, 1

</llo_original>
